<compile_context>
chip_gen: v7x
topology: tpu7x:2x2x1
jax: 0.10.0
libtpu: 0.0.40
codegen_flags: <defaults>
</compile_context>

<pallas_src>
import numpy as np
import jax
import jax.numpy as jnp
from jax import lax
from jax.experimental import pallas as pl
from jax.experimental.pallas import tpu as pltpu


# ----------------------------------------------------------------------------
# Gaussian kernel construction (mirrors LowPassFilter.__init__)
# ----------------------------------------------------------------------------
def _gaussian_size_sigma(scale):
    sigma = 0.5 * (scale ** 2 - 1) ** 0.5
    size = int(1 + 2 * 2.5 * sigma)
    if size % 2 == 0:
        size += 1
    return size, sigma


def _gaussian_taps_1d(scale):
    """1-D taps whose outer product equals the normalized 3-D kernel."""
    size, sigma = _gaussian_size_sigma(scale)
    rng = np.arange(size, dtype=np.float32) - size // 2
    g = np.exp(-(rng ** 2) / (2.0 * np.float32(sigma) ** 2)).astype(np.float32)
    g = g / g.sum(dtype=np.float32)
    return g, size


def _gaussian_kernel_3d(scale):
    """3-D kernel built exactly like LowPassFilter.__init__ (for the ref)."""
    size, sigma = _gaussian_size_sigma(scale)
    rng = np.arange(size, dtype=np.float32) - size // 2
    x = rng.reshape(size, 1, 1)
    y = rng.reshape(1, size, 1)
    z = rng.reshape(1, 1, size)
    k = np.exp(-(x ** 2 + y ** 2 + z ** 2)
               / (2.0 * np.float32(sigma) ** 2)).astype(np.float32)
    return k / k.sum(dtype=np.float32), size


# ----------------------------------------------------------------------------
# VMEM budget model / block sizing
# ----------------------------------------------------------------------------
def _padded_bytes(shape, itemsize):
    """Bytes of a VMEM buffer including Mosaic's (8, 128) tile padding."""
    s = list(shape)
    s[-1] = -(-s[-1] // 128) * 128
    s[-2] = -(-s[-2] // 8) * 8
    n = 1
    for d in s:
        n *= int(d)
    return n * itemsize


def _device_vmem_policy():
    """(footprint budget, vmem_limit_bytes, prefer >=2 even grid steps)."""
    kind = ""
    try:
        kind = jax.devices()[0].device_kind.lower()
    except Exception:
        pass
    if "v7" in kind:
        # v7x: 64 MiB physical VMEM, 2 TensorCores -> modest footprint and an
        # even >=2-step "parallel" grid so both cores get balanced work.
        return 24 << 20, 48 << 20, True
    if ("v5" in kind) or ("v6" in kind):
        # Single-TC, 128 MiB VMEM parts: splitting the grid only adds per-step
        # overhead, so let the block grow.
        return 56 << 20, 96 << 20, False
    # Unknown device: conservative (previously validated 32 MiB limit).
    return 20 << 20, 32 << 20, True


def _choose_block_t(T, footprint_fn, budget_bytes, prefer_multi_step):
    """Largest divisor of T whose *total* per-step VMEM footprint fits."""
    cands = [bt for bt in range(1, T + 1)
             if T % bt == 0 and footprint_fn(bt) <= budget_bytes]
    if not cands:
        return 1
    if prefer_multi_step and T >= 2:
        even = [bt for bt in cands if (T // bt) >= 2 and (T // bt) % 2 == 0]
        if even:
            return max(even)
        multi = [bt for bt in cands if (T // bt) >= 2]
        if multi:
            return max(multi)
    return max(cands)


# ----------------------------------------------------------------------------
# Kernel factory
# ----------------------------------------------------------------------------
def _make_separable_kernel(w1d, size, Bt, X, Y, Z, C, pad):
    """Separable 3-pass Gaussian on a (Bt, X, Y, Z*C) block (Z merged with C)."""
    Xp, Yp, Zp = X + 2 * pad, Y + 2 * pad, Z + 2 * pad
    Lp = Zp * C                       # merged padded (z, channel) lane axis
    L = Z * C                         # merged unpadded lane axis
    w = [float(v) for v in w1d]       # taps baked as immediates
    half = size // 2                  # size is always odd

    def tap_sum(read):
        # Symmetric Gaussian: pair mirrored taps first -> (half+1) muls
        # instead of size muls per element per pass.
        acc = w[half] * read(half)
        for k in range(half):
            acc = acc + w[k] * (read(k) + read(size - 1 - k))
        return acc

    def kernel(x_ref, o_ref, pad_ref, stage_ref):
        f32 = jnp.float32

        # ---- zero only the 6 halo slabs (interior is overwritten below) ----
        # Zeroed every step: the grid axis is "parallel", so on 2-TC parts a
        # core may never see program_id 0.  The halo is small vs. the interior.
        if pad > 0:
            pad_ref[:, 0:pad, :, :] = jnp.zeros((Bt, pad, Yp, Lp), f32)
            pad_ref[:, pad + X:Xp, :, :] = jnp.zeros((Bt, pad, Yp, Lp), f32)
            pad_ref[:, pad:pad + X, 0:pad, :] = jnp.zeros((Bt, X, pad, Lp), f32)
            pad_ref[:, pad:pad + X, pad + Y:Yp, :] = jnp.zeros((Bt, X, pad, Lp), f32)
            pad_ref[:, pad:pad + X, pad:pad + Y, 0:pad * C] = (
                jnp.zeros((Bt, X, Y, pad * C), f32))
            pad_ref[:, pad:pad + X, pad:pad + Y, (pad + Z) * C:Lp] = (
                jnp.zeros((Bt, X, Y, pad * C), f32))

        # ---- interior write (f32 accumulation; cast only at final store) ----
        pad_ref[:, pad:pad + X, pad:pad + Y, pad * C:(pad + Z) * C] = (
            x_ref[...].astype(f32))

        # ---- X pass: major-axis tap offsets read straight from pad_ref ----
        stage_ref[...] = tap_sum(lambda k: pad_ref[:, k:k + X, :, :])

        # ---- Y pass: sublane-axis tap offsets on stage_ref; reuse pad_ref ----
        pad_ref[:, 0:X, 0:Y, :] = tap_sum(lambda k: stage_ref[:, :, k:k + Y, :])

        # ---- Z pass: lane-axis offsets of k*C on the merged (Z, C) axis ----
        o_ref[...] = tap_sum(
            lambda k: pad_ref[:, 0:X, 0:Y, k * C:k * C + L]).astype(o_ref.dtype)

    return kernel


# ----------------------------------------------------------------------------
# Public wrapper
# ----------------------------------------------------------------------------
def low_pass_filter(image, scale, stride=1):
    """Pallas equivalent of LowPassFilter(scale, stride)(image)."""
    if scale <= 1:
        assert stride == 1
        return image

    w1d, size = _gaussian_taps_1d(scale)
    pad = size // 2

    *lead, X, Y, Z, C = image.shape
    T = int(np.prod(lead)) if lead else 1
    L = Z * C
    # Free view: merge Z with C so the last (lane) axis is as dense as possible.
    x = image.reshape(T, X, Y, L)

    Xp, Yp, Zp = X + 2 * pad, Y + 2 * pad, Z + 2 * pad
    itemsize = int(jnp.dtype(image.dtype).itemsize)
    budget, vmem_limit, prefer_multi = _device_vmem_policy()

    def footprint(bt):
        return (_padded_bytes((bt, Xp, Yp, Zp * C), 4)        # pad_ref (f32)
                + _padded_bytes((bt, X, Yp, Zp * C), 4)        # stage_ref (f32)
                + 2 * _padded_bytes((bt, X, Y, L), itemsize)   # input, dbl-buf
                + 2 * _padded_bytes((bt, X, Y, L), itemsize))  # output, dbl-buf

    Bt = _choose_block_t(T, footprint, budget, prefer_multi)
    kernel = _make_separable_kernel(w1d, size, Bt, X, Y, Z, C, pad)

    out = pl.pallas_call(
        kernel,
        out_shape=jax.ShapeDtypeStruct((T, X, Y, L), image.dtype),
        grid=(T // Bt,),
        in_specs=[pl.BlockSpec((Bt, X, Y, L), lambda n: (n, 0, 0, 0))],
        out_specs=pl.BlockSpec((Bt, X, Y, L), lambda n: (n, 0, 0, 0)),
        scratch_shapes=[
            pltpu.VMEM((Bt, Xp, Yp, Zp * C), jnp.float32),   # padded volume
            pltpu.VMEM((Bt, X, Yp, Zp * C), jnp.float32),    # X-pass staging
        ],
        compiler_params=pltpu.CompilerParams(
            dimension_semantics=("parallel",),
            vmem_limit_bytes=vmem_limit),
    )(x)

    out = out.reshape(T, X, Y, Z, C)
    if stride != 1:
        # Strided conv == dense conv subsampled (identical values).
        # TODO(synk): fold the stride into the in-kernel separable passes.
        out = out[:, ::stride, ::stride, ::stride, :]
    Xo, Yo, Zo = out.shape[1:4]
    return out.reshape(*lead, Xo, Yo, Zo, C)


# ----------------------------------------------------------------------------
# Pure-JAX reference (lax.conv_general_dilated) for correctness checking
# ----------------------------------------------------------------------------
def low_pass_filter_ref(image, scale, stride=1):
    if scale <= 1:
        return image
    kern, size = _gaussian_kernel_3d(scale)
    pad = size // 2
    *lead, X, Y, Z, C = image.shape
    T = int(np.prod(lead)) if lead else 1
    x = image.reshape(T, X, Y, Z, C)
    x = jnp.transpose(x, (0, 4, 1, 2, 3)).reshape(T * C, 1, X, Y, Z)
    out = lax.conv_general_dilated(
        x, jnp.asarray(kern).reshape(1, 1, size, size, size),
        window_strides=(stride,) * 3, padding=[(pad, pad)] * 3,
        dimension_numbers=("NCDHW", "OIDHW", "NCDHW"))
    _, _, Xo, Yo, Zo = out.shape
    out = out.reshape(T, C, Xo, Yo, Zo)
    out = jnp.transpose(out, (0, 2, 3, 4, 1))
    return out.reshape(*lead, Xo, Yo, Zo, C)


if __name__ == "__main__":
    key = jax.random.PRNGKey(0)

    # Main demo: image [batch=2, x=8, y=8, z=8, channel=4]
    image = jax.random.normal(key, (2, 8, 8, 8, 4), dtype=jnp.float32)
    scale = 2.0                       # -> sigma ~0.866, kernel size 5, pad 2

    out = jax.block_until_ready(low_pass_filter(image, scale, stride=1))
    ref = low_pass_filter_ref(image, scale, stride=1)
    assert out.shape == ref.shape == (2, 8, 8, 8, 4), (out.shape, ref.shape)
    np.testing.assert_allclose(np.asarray(out), np.asarray(ref),
                               atol=3e-5, rtol=3e-5)

    # stride=2 path (dense kernel + wrapper subsample; same compiled kernel)
    out_s = jax.block_until_ready(low_pass_filter(image, scale, stride=2))
    ref_s = low_pass_filter_ref(image, scale, stride=2)
    assert out_s.shape == ref_s.shape, (out_s.shape, ref_s.shape)
    np.testing.assert_allclose(np.asarray(out_s), np.asarray(ref_s),
                               atol=3e-5, rtol=3e-5)

    # Wider-channel case exercising the fully lane-dense (Z*C = 128) layout.
    image2 = jax.random.normal(jax.random.PRNGKey(0), (1, 8, 8, 4, 32),
                               dtype=jnp.float32)
    out2 = jax.block_until_ready(low_pass_filter(image2, scale, stride=1))
    ref2 = low_pass_filter_ref(image2, scale, stride=1)
    np.testing.assert_allclose(np.asarray(out2), np.asarray(ref2),
                               atol=3e-5, rtol=3e-5)

    # scale <= 1 passthrough branch
    passthrough = low_pass_filter(image, 1.0)
    assert passthrough.shape == image.shape

    print("KERNEL_OK")
</pallas_src>

<mosaic_0001>
module attributes {stable_mosaic.version = 11 : i64} {
  func.func @kernel(%arg0: i32, %arg1: memref<1x8x8x32xf32, #tpu.memory_space<vmem>>, %arg2: memref<1x8x8x32xf32, #tpu.memory_space<vmem>>, %arg3: memref<1x12x12x48xf32, #tpu.memory_space<vmem>>, %arg4: memref<1x8x12x48xf32, #tpu.memory_space<vmem>>) attributes {dimension_semantics = [#tpu.dimension_semantics<parallel>], iteration_bounds = array<i64: 2>, scalar_prefetch = 0 : i64, scratch_operands = 2 : i64, tpu.core_type = #tpu.core_type<tc>, window_params = [{transform_indices = @transform_0, window_bounds = array<i64: 1, 8, 8, 32>}, {transform_indices = @transform_1, window_bounds = array<i64: 1, 8, 8, 32>}]} {
    %cst = arith.constant 0.000000e+00 : f32
    %0 = vector.broadcast %cst : f32 to vector<1x2x12x48xf32>
    %c0 = arith.constant 0 : index
    %c0_0 = arith.constant 0 : index
    %c0_1 = arith.constant 0 : index
    %c0_2 = arith.constant 0 : index
    %1 = vector.load %arg3[%c0, %c0_0, %c0_1, %c0_2] : memref<1x12x12x48xf32, #tpu.memory_space<vmem>>, vector<1x2x12x48xf32>
    tpu.vector_store %arg3[%c0, %c0_0, %c0_1, %c0_2], %0 {strides = array<i32>} : memref<1x12x12x48xf32, #tpu.memory_space<vmem>>, vector<1x2x12x48xf32>,
    %cst_3 = arith.constant 0.000000e+00 : f32
    %2 = vector.broadcast %cst_3 : f32 to vector<1x2x12x48xf32>
    %c0_4 = arith.constant 0 : index
    %c10 = arith.constant 10 : index
    %c0_5 = arith.constant 0 : index
    %c0_6 = arith.constant 0 : index
    %3 = vector.load %arg3[%c0_4, %c10, %c0_5, %c0_6] : memref<1x12x12x48xf32, #tpu.memory_space<vmem>>, vector<1x2x12x48xf32>
    tpu.vector_store %arg3[%c0_4, %c10, %c0_5, %c0_6], %2 {strides = array<i32>} : memref<1x12x12x48xf32, #tpu.memory_space<vmem>>, vector<1x2x12x48xf32>,
    %cst_7 = arith.constant 0.000000e+00 : f32
    %4 = vector.broadcast %cst_7 : f32 to vector<1x8x2x48xf32>
    %c0_8 = arith.constant 0 : index
    %c2 = arith.constant 2 : index
    %c0_9 = arith.constant 0 : index
    %c0_10 = arith.constant 0 : index
    %5 = vector.load %arg3[%c0_8, %c2, %c0_9, %c0_10] : memref<1x12x12x48xf32, #tpu.memory_space<vmem>>, vector<1x8x2x48xf32>
    tpu.vector_store %arg3[%c0_8, %c2, %c0_9, %c0_10], %4 {strides = array<i32>} : memref<1x12x12x48xf32, #tpu.memory_space<vmem>>, vector<1x8x2x48xf32>,
    %cst_11 = arith.constant 0.000000e+00 : f32
    %6 = vector.broadcast %cst_11 : f32 to vector<1x8x2x48xf32>
    %c0_12 = arith.constant 0 : index
    %c2_13 = arith.constant 2 : index
    %c10_14 = arith.constant 10 : index
    %c0_15 = arith.constant 0 : index
    %7 = vector.load %arg3[%c0_12, %c2_13, %c10_14, %c0_15] : memref<1x12x12x48xf32, #tpu.memory_space<vmem>>, vector<1x8x2x48xf32>
    tpu.vector_store %arg3[%c0_12, %c2_13, %c10_14, %c0_15], %6 {strides = array<i32>} : memref<1x12x12x48xf32, #tpu.memory_space<vmem>>, vector<1x8x2x48xf32>,
    %cst_16 = arith.constant 0.000000e+00 : f32
    %8 = vector.broadcast %cst_16 : f32 to vector<1x8x8x8xf32>
    %c0_17 = arith.constant 0 : index
    %c2_18 = arith.constant 2 : index
    %c2_19 = arith.constant 2 : index
    %c0_20 = arith.constant 0 : index
    %9 = vector.load %arg3[%c0_17, %c2_18, %c2_19, %c0_20] : memref<1x12x12x48xf32, #tpu.memory_space<vmem>>, vector<1x8x8x8xf32>
    tpu.vector_store %arg3[%c0_17, %c2_18, %c2_19, %c0_20], %8 {strides = array<i32>} : memref<1x12x12x48xf32, #tpu.memory_space<vmem>>, vector<1x8x8x8xf32>,
    %cst_21 = arith.constant 0.000000e+00 : f32
    %10 = vector.broadcast %cst_21 : f32 to vector<1x8x8x8xf32>
    %c0_22 = arith.constant 0 : index
    %c2_23 = arith.constant 2 : index
    %c2_24 = arith.constant 2 : index
    %c40 = arith.constant 40 : index
    %11 = vector.load %arg3[%c0_22, %c2_23, %c2_24, %c40] : memref<1x12x12x48xf32, #tpu.memory_space<vmem>>, vector<1x8x8x8xf32>
    tpu.vector_store %arg3[%c0_22, %c2_23, %c2_24, %c40], %10 {strides = array<i32>} : memref<1x12x12x48xf32, #tpu.memory_space<vmem>>, vector<1x8x8x8xf32>,
    %c0_25 = arith.constant 0 : index
    %c0_26 = arith.constant 0 : index
    %c0_27 = arith.constant 0 : index
    %c0_28 = arith.constant 0 : index
    %12 = vector.load %arg1[%c0_25, %c0_26, %c0_27, %c0_28] : memref<1x8x8x32xf32, #tpu.memory_space<vmem>>, vector<1x8x8x32xf32>
    %c0_29 = arith.constant 0 : index
    %c2_30 = arith.constant 2 : index
    %c2_31 = arith.constant 2 : index
    %c8 = arith.constant 8 : index
    %13 = vector.load %arg3[%c0_29, %c2_30, %c2_31, %c8] : memref<1x12x12x48xf32, #tpu.memory_space<vmem>>, vector<1x8x8x32xf32>
    tpu.vector_store %arg3[%c0_29, %c2_30, %c2_31, %c8], %12 {strides = array<i32>} : memref<1x12x12x48xf32, #tpu.memory_space<vmem>>, vector<1x8x8x32xf32>,
    %c0_32 = arith.constant 0 : index
    %c2_33 = arith.constant 2 : index
    %c0_34 = arith.constant 0 : index
    %c0_35 = arith.constant 0 : index
    %14 = vector.load %arg3[%c0_32, %c2_33, %c0_34, %c0_35] : memref<1x12x12x48xf32, #tpu.memory_space<vmem>>, vector<1x8x12x48xf32>
    %cst_36 = arith.constant 0.461722881 : f32
    %15 = vector.broadcast %cst_36 : f32 to vector<1x8x12x48xf32>
    %16 = arith.mulf %15, %14 : vector<1x8x12x48xf32>
    %c0_37 = arith.constant 0 : index
    %c0_38 = arith.constant 0 : index
    %c0_39 = arith.constant 0 : index
    %c0_40 = arith.constant 0 : index
    %17 = vector.load %arg3[%c0_37, %c0_38, %c0_39, %c0_40] : memref<1x12x12x48xf32, #tpu.memory_space<vmem>>, vector<1x8x12x48xf32>
    %c0_41 = arith.constant 0 : index
    %c4 = arith.constant 4 : index
    %c0_42 = arith.constant 0 : index
    %c0_43 = arith.constant 0 : index
    %18 = vector.load %arg3[%c0_41, %c4, %c0_42, %c0_43] : memref<1x12x12x48xf32, #tpu.memory_space<vmem>>, vector<1x8x12x48xf32>
    %19 = arith.addf %17, %18 : vector<1x8x12x48xf32>
    %cst_44 = arith.constant 3.208210e-02 : f32
    %20 = vector.broadcast %cst_44 : f32 to vector<1x8x12x48xf32>
    %21 = arith.mulf %20, %19 : vector<1x8x12x48xf32>
    %22 = arith.addf %16, %21 : vector<1x8x12x48xf32>
    %c0_45 = arith.constant 0 : index
    %c1 = arith.constant 1 : index
    %c0_46 = arith.constant 0 : index
    %c0_47 = arith.constant 0 : index
    %23 = vector.load %arg3[%c0_45, %c1, %c0_46, %c0_47] : memref<1x12x12x48xf32, #tpu.memory_space<vmem>>, vector<1x8x12x48xf32>
    %c0_48 = arith.constant 0 : index
    %c3 = arith.constant 3 : index
    %c0_49 = arith.constant 0 : index
    %c0_50 = arith.constant 0 : index
    %24 = vector.load %arg3[%c0_48, %c3, %c0_49, %c0_50] : memref<1x12x12x48xf32, #tpu.memory_space<vmem>>, vector<1x8x12x48xf32>
    %25 = arith.addf %23, %24 : vector<1x8x12x48xf32>
    %cst_51 = arith.constant 0.237056434 : f32
    %26 = vector.broadcast %cst_51 : f32 to vector<1x8x12x48xf32>
    %27 = arith.mulf %26, %25 : vector<1x8x12x48xf32>
    %28 = arith.addf %22, %27 : vector<1x8x12x48xf32>
    %c0_52 = arith.constant 0 : index
    %c0_53 = arith.constant 0 : index
    %c0_54 = arith.constant 0 : index
    %c0_55 = arith.constant 0 : index
    %29 = vector.load %arg4[%c0_52, %c0_53, %c0_54, %c0_55] : memref<1x8x12x48xf32, #tpu.memory_space<vmem>>, vector<1x8x12x48xf32>
    tpu.vector_store %arg4[%c0_52, %c0_53, %c0_54, %c0_55], %28 {strides = array<i32>} : memref<1x8x12x48xf32, #tpu.memory_space<vmem>>, vector<1x8x12x48xf32>,
    %c0_56 = arith.constant 0 : index
    %c0_57 = arith.constant 0 : index
    %c2_58 = arith.constant 2 : index
    %c0_59 = arith.constant 0 : index
    %30 = vector.load %arg4[%c0_56, %c0_57, %c2_58, %c0_59] : memref<1x8x12x48xf32, #tpu.memory_space<vmem>>, vector<1x8x8x48xf32>
    %cst_60 = arith.constant 0.461722881 : f32
    %31 = vector.broadcast %cst_60 : f32 to vector<1x8x8x48xf32>
    %32 = arith.mulf %31, %30 : vector<1x8x8x48xf32>
    %c0_61 = arith.constant 0 : index
    %c0_62 = arith.constant 0 : index
    %c0_63 = arith.constant 0 : index
    %c0_64 = arith.constant 0 : index
    %33 = vector.load %arg4[%c0_61, %c0_62, %c0_63, %c0_64] : memref<1x8x12x48xf32, #tpu.memory_space<vmem>>, vector<1x8x8x48xf32>
    %c0_65 = arith.constant 0 : index
    %c0_66 = arith.constant 0 : index
    %c4_67 = arith.constant 4 : index
    %c0_68 = arith.constant 0 : index
    %34 = vector.load %arg4[%c0_65, %c0_66, %c4_67, %c0_68] : memref<1x8x12x48xf32, #tpu.memory_space<vmem>>, vector<1x8x8x48xf32>
    %35 = arith.addf %33, %34 : vector<1x8x8x48xf32>
    %cst_69 = arith.constant 3.208210e-02 : f32
    %36 = vector.broadcast %cst_69 : f32 to vector<1x8x8x48xf32>
    %37 = arith.mulf %36, %35 : vector<1x8x8x48xf32>
    %38 = arith.addf %32, %37 : vector<1x8x8x48xf32>
    %c0_70 = arith.constant 0 : index
    %c0_71 = arith.constant 0 : index
    %c1_72 = arith.constant 1 : index
    %c0_73 = arith.constant 0 : index
    %39 = vector.load %arg4[%c0_70, %c0_71, %c1_72, %c0_73] : memref<1x8x12x48xf32, #tpu.memory_space<vmem>>, vector<1x8x8x48xf32>
    %c0_74 = arith.constant 0 : index
    %c0_75 = arith.constant 0 : index
    %c3_76 = arith.constant 3 : index
    %c0_77 = arith.constant 0 : index
    %40 = vector.load %arg4[%c0_74, %c0_75, %c3_76, %c0_77] : memref<1x8x12x48xf32, #tpu.memory_space<vmem>>, vector<1x8x8x48xf32>
    %41 = arith.addf %39, %40 : vector<1x8x8x48xf32>
    %cst_78 = arith.constant 0.237056434 : f32
    %42 = vector.broadcast %cst_78 : f32 to vector<1x8x8x48xf32>
    %43 = arith.mulf %42, %41 : vector<1x8x8x48xf32>
    %44 = arith.addf %38, %43 : vector<1x8x8x48xf32>
    %c0_79 = arith.constant 0 : index
    %c0_80 = arith.constant 0 : index
    %c0_81 = arith.constant 0 : index
    %c0_82 = arith.constant 0 : index
    %45 = vector.load %arg3[%c0_79, %c0_80, %c0_81, %c0_82] : memref<1x12x12x48xf32, #tpu.memory_space<vmem>>, vector<1x8x8x48xf32>
    tpu.vector_store %arg3[%c0_79, %c0_80, %c0_81, %c0_82], %44 {strides = array<i32>} : memref<1x12x12x48xf32, #tpu.memory_space<vmem>>, vector<1x8x8x48xf32>,
    %c0_83 = arith.constant 0 : index
    %c0_84 = arith.constant 0 : index
    %c0_85 = arith.constant 0 : index
    %c8_86 = arith.constant 8 : index
    %46 = vector.load %arg3[%c0_83, %c0_84, %c0_85, %c8_86] : memref<1x12x12x48xf32, #tpu.memory_space<vmem>>, vector<1x8x8x32xf32>
    %cst_87 = arith.constant 0.461722881 : f32
    %47 = vector.broadcast %cst_87 : f32 to vector<1x8x8x32xf32>
    %48 = arith.mulf %47, %46 : vector<1x8x8x32xf32>
    %c0_88 = arith.constant 0 : index
    %c0_89 = arith.constant 0 : index
    %c0_90 = arith.constant 0 : index
    %c0_91 = arith.constant 0 : index
    %49 = vector.load %arg3[%c0_88, %c0_89, %c0_90, %c0_91] : memref<1x12x12x48xf32, #tpu.memory_space<vmem>>, vector<1x8x8x32xf32>
    %c0_92 = arith.constant 0 : index
    %c0_93 = arith.constant 0 : index
    %c0_94 = arith.constant 0 : index
    %c16 = arith.constant 16 : index
    %50 = vector.load %arg3[%c0_92, %c0_93, %c0_94, %c16] : memref<1x12x12x48xf32, #tpu.memory_space<vmem>>, vector<1x8x8x32xf32>
    %51 = arith.addf %49, %50 : vector<1x8x8x32xf32>
    %cst_95 = arith.constant 3.208210e-02 : f32
    %52 = vector.broadcast %cst_95 : f32 to vector<1x8x8x32xf32>
    %53 = arith.mulf %52, %51 : vector<1x8x8x32xf32>
    %54 = arith.addf %48, %53 : vector<1x8x8x32xf32>
    %c0_96 = arith.constant 0 : index
    %c0_97 = arith.constant 0 : index
    %c0_98 = arith.constant 0 : index
    %c4_99 = arith.constant 4 : index
    %55 = vector.load %arg3[%c0_96, %c0_97, %c0_98, %c4_99] : memref<1x12x12x48xf32, #tpu.memory_space<vmem>>, vector<1x8x8x32xf32>
    %c0_100 = arith.constant 0 : index
    %c0_101 = arith.constant 0 : index
    %c0_102 = arith.constant 0 : index
    %c12 = arith.constant 12 : index
    %56 = vector.load %arg3[%c0_100, %c0_101, %c0_102, %c12] : memref<1x12x12x48xf32, #tpu.memory_space<vmem>>, vector<1x8x8x32xf32>
    %57 = arith.addf %55, %56 : vector<1x8x8x32xf32>
    %cst_103 = arith.constant 0.237056434 : f32
    %58 = vector.broadcast %cst_103 : f32 to vector<1x8x8x32xf32>
    %59 = arith.mulf %58, %57 : vector<1x8x8x32xf32>
    %60 = arith.addf %54, %59 : vector<1x8x8x32xf32>
    %c0_104 = arith.constant 0 : index
    %c0_105 = arith.constant 0 : index
    %c0_106 = arith.constant 0 : index
    %c0_107 = arith.constant 0 : index
    %61 = vector.load %arg2[%c0_104, %c0_105, %c0_106, %c0_107] : memref<1x8x8x32xf32, #tpu.memory_space<vmem>>, vector<1x8x8x32xf32>
    tpu.vector_store %arg2[%c0_104, %c0_105, %c0_106, %c0_107], %60 {strides = array<i32>} : memref<1x8x8x32xf32, #tpu.memory_space<vmem>>, vector<1x8x8x32xf32>,
    return
  }
  func.func @transform_0(%arg0: i32) -> (i32, i32, i32, i32) {
    %c0_i32 = arith.constant 0 : i32
    %c0_i32_0 = arith.constant 0 : i32
    %c0_i32_1 = arith.constant 0 : i32
    %c0_i32_2 = arith.constant 0 : i32
    return %arg0, %c0_i32, %c0_i32_0, %c0_i32_1 : i32, i32, i32, i32
  }
  func.func @transform_1(%arg0: i32) -> (i32, i32, i32, i32) {
    %c0_i32 = arith.constant 0 : i32
    %c0_i32_0 = arith.constant 0 : i32
    %c0_i32_1 = arith.constant 0 : i32
    %c0_i32_2 = arith.constant 0 : i32
    return %arg0, %c0_i32, %c0_i32_0, %c0_i32_1 : i32, i32, i32, i32
  }
}

</mosaic_0001>

<llo_original>
// kernel: tpu_custom_call.1
$region0: #{tpu_custom_call.1}
  #allocation0 [shape = 'u32[]', space=smem, size = 0x4, offset = 0x4, fixed_abs, tag = 'smem constant byte address 0x4 - core index']
  #allocation1 [shape = 'u32[144,128]{1,0:T(1,128)}', space=vmem, size = 0x12000, scoped, tag = 'internal scratch']
  #allocation2 [shape = 'f32[1,12,12,48]{3,2,1,0:T(8,128)}', space=vmem, size = 0x18000, scoped, tag = 'scratch operand']
  #allocation3 [shape = 'f32[1,8,12,48]{3,2,1,0:T(8,128)}', space=vmem, size = 0x10000, scoped, tag = 'scratch operand']
  %s0 = inlined_call_operand.hbm [shape: f32[2,8,8,32], index: 0, kind: input, shape index: {}]
  %s1 = inlined_call_operand.hbm [shape: f32[2,8,8,32], index: 1, kind: output, shape index: {}]
  %s2 = sld [smem:[#allocation0]]
  $region41: #{tpu_custom_call.1} parent=0
    _
  %s4 = ssub.s32 1, %s2
  %s5 = scalar_select 0, %s4, %s2
  $region1: #{tpu_custom_call.1} parent=0
    #allocation4 [shape = 'u8[65536]{0}', space=vmem, size = 0x10000, scoped, tag = 'input window, operand 0']
    #allocation5 [shape = 's32[2]{0}', space=sflag, size = 0x8, scoped, tag = 'scoped memory for tpu_custom_call.1']
    #allocation6 [shape = 's32[2]{0}', space=sflag, size = 0x8, scoped, tag = 'scoped memory for tpu_custom_call.1']
    #allocation7 [shape = 'u8[65536]{0}', space=vmem, size = 0x10000, scoped, tag = 'output window, operand 0']
    %6 = vsyncpa [#allocation5], 0
    %s7 = scalar_lea.sflag [#allocation5], 1
    %8 = vsyncpa %s7, 0
    %9 = vsyncpa [#allocation6], 0
    %s10 = scalar_lea.sflag [#allocation6], 1
    %11 = vsyncpa %s10, 0
    loop: start=0, step=1, limit=4
    $region2: #{tpu_custom_call.1} parent=1 // loop_pre_header
      _
    $region3: #{tpu_custom_call.1} parent=1 // loop_header
      %s13 = sphi 0, %s17
      %p14 = scmp.ge.s32.totalorder %s13, 4
      %s23 = sphi 0, %s25
      %s26 = sphi 0, %s23
      %s27 = sphi 0, %s26
      %s43 = sphi 0, %s27
      %s49 = sphi 0, %s51
      %s52 = sphi 0, %s49
      %s53 = sphi 0, %s52
      %s69 = sphi 0, %s53
    $region4: #{tpu_custom_call.1} parent=1 // loop_header_branch
      %16 = sbr.rel (%p14) target = $region8
    $region5: #{tpu_custom_call.1} parent=1 // loop_body
      %s18 = ssub.s32 %s13, 1
      %s19 = ssub.s32 %s13, 2
      %s20 = sadd.s32 %s13, 1
      %s21 = ssub.s32 %s13, %s20
      %p22 = scmp.eq.s32.totalorder %s21, 0
      %s24 = sadd.s32 %s23, 1
      %s25 = scalar_select %p22, %s23, %s24
      %p28 = pneg %p22
      %p29 = scmp.eq.s32.totalorder %s13, 1
      %p30 = por %p28, %p29
      %p31 = scmp.ne.s32.totalorder %s23, %s26
      %p32 = scmp.eq.s32.totalorder %s13, 0
      %p33 = por %p31, %p32
      %p34 = scmp.ne.s32.totalorder %s23, %s26
      %p35 = scmp.eq.s32.totalorder %s18, 1
      %p36 = por %p34, %p35
      %p37 = scmp.ne.s32.totalorder %s26, %s27
      %p38 = scmp.eq.s32.totalorder %s18, 0
      %p39 = por %p37, %p38
      %p40 = scmp.ne.s32.totalorder %s26, %s27
      %p41 = scmp.eq.s32.totalorder %s19, 1
      %p42 = por %p40, %p41
      %p44 = scmp.ne.s32.totalorder %s27, %s43
      %p45 = scmp.eq.s32.totalorder %s19, 0
      %p46 = por %p44, %p45
      %s47 = ssub.s32 %s13, %s20
      %p48 = scmp.eq.s32.totalorder %s47, 0
      %s50 = sadd.s32 %s49, 1
      %s51 = scalar_select %p48, %s49, %s50
      %p54 = pneg %p48
      %p55 = scmp.eq.s32.totalorder %s13, 1
      %p56 = por %p54, %p55
      %p57 = scmp.ne.s32.totalorder %s49, %s52
      %p58 = scmp.eq.s32.totalorder %s13, 0
      %p59 = por %p57, %p58
      %p60 = scmp.ne.s32.totalorder %s49, %s52
      %p61 = scmp.eq.s32.totalorder %s18, 1
      %p62 = por %p60, %p61
      %p63 = scmp.ne.s32.totalorder %s52, %s53
      %p64 = scmp.eq.s32.totalorder %s18, 0
      %p65 = por %p63, %p64
      %p66 = scmp.ne.s32.totalorder %s52, %s53
      %p67 = scmp.eq.s32.totalorder %s19, 1
      %p68 = por %p66, %p67
      %p70 = scmp.ne.s32.totalorder %s53, %s69
      %p71 = scmp.eq.s32.totalorder %s19, 0
      %p72 = por %p70, %p71
      %p73 = scmp.le.s32.totalorder 1, %s13
      %p74 = scmp.lt.s32.totalorder %s13, 3
      %p75 = pnand %p73, %p74
      %p76 = pneg %p75
      // Predicated region
      $region9: #{tpu_custom_call.1} parent=5 // pred_check
        _
      $region10: #{tpu_custom_call.1} parent=5 // pred_check_branch
        %78 = sbr.rel (%p75) target = $region12
      $region11: #{tpu_custom_call.1} parent=5 // pred_region
        %s79 = ssub.s32 %s13, 1
      $region12: #{tpu_custom_call.1} parent=5 // pred_fallthru
        _
      %p80 = scmp.lt.s32.totalorder %s13, 2
      // Predicated region
      $region13: #{tpu_custom_call.1} parent=5 // pred_check
        %p81 = pneg %p80
      $region14: #{tpu_custom_call.1} parent=5 // pred_check_branch
        %83 = sbr.rel (%p81) target = $region16
      $region15: #{tpu_custom_call.1} parent=5 // pred_region
        // Predicated region
        $region17: #{tpu_custom_call.1} parent=15 // pred_check
          %p84 = pneg %p33
        $region18: #{tpu_custom_call.1} parent=15 // pred_check_branch
          %86 = sbr.rel (%p84) target = $region20
        $region19: #{tpu_custom_call.1} parent=15 // pred_region
          %s87 = sand.u32 %s23, 1
          %s88 = scalar_lea.sflag [#allocation5], %s87
          %s89 = sand.u32 %s23, 1
          %s90 = smul.addr %s89, 64
          %s91 = scalar_lea.vmem [#allocation4], %s90
          %s93 = ssub.s32 1024, 1024
          %94 = vsyncadd %s88, %s93
          %s95 = smul.addr %s13, 8
          %s96 = smul.addr %s95, 128
          %s97 = scalar_lea.hbm %s0, %s96
          %s98 = sshll.u32 %s91, 4
          %s99 = int_to_ptr.vmem [resolvable:$true] %s98
          %104 = dma.hbm_to_vmem [thread:$0]  %s97, 1024, %s99, %s88, 128, 128, 8
        $region20: #{tpu_custom_call.1} parent=15 // pred_fallthru
          _
      $region16: #{tpu_custom_call.1} parent=5 // pred_fallthru
        _
      %p105 = scmp.le.s32.totalorder 1, %s13
      %p106 = scmp.lt.s32.totalorder %s13, 3
      %p107 = pnand %p105, %p106
      %p108 = pneg %p107
      // Predicated region
      $region21: #{tpu_custom_call.1} parent=5 // pred_check
        _
      $region22: #{tpu_custom_call.1} parent=5 // pred_check_branch
        %110 = sbr.rel (%p107) target = $region24
      $region23: #{tpu_custom_call.1} parent=5 // pred_region
        %s111 = ssub.s32 %s13, 1
        %s112 = sand.u32 %s26, 1
        %s113 = scalar_lea.sflag [#allocation5], %s112
        %s114 = sand.u32 %s26, 1
        %s115 = smul.addr %s114, 64
        %s116 = scalar_lea.vmem [#allocation4], %s115
        // Predicated region
        $region25: #{tpu_custom_call.1} parent=23 // pred_check
          %p117 = pneg %p39
        $region26: #{tpu_custom_call.1} parent=23 // pred_check_branch
          %119 = sbr.rel (%p117) target = $region28
        $region27: #{tpu_custom_call.1} parent=23 // pred_region
          %120 = dma.done %s113, 1024
        $region28: #{tpu_custom_call.1} parent=23 // pred_fallthru
          _
        %s121 = sand.u32 %s26, 1
        %s122 = scalar_lea.sflag [#allocation5], %s121
        %s123 = sand.u32 %s26, 1
        %s124 = smul.addr %s123, 64
        %s125 = scalar_lea.vmem [#allocation4], %s124
        %p126 = pneg %p39
        %p127 = pneg %p36
        %p128 = pneg %p65
        %p129 = pneg %p62
        %s130 = sand.u32 %s52, 1
        %s131 = scalar_lea.sflag [#allocation6], %s130
        %s132 = sand.u32 %s52, 1
        %s133 = smul.addr %s132, 64
        %s134 = scalar_lea.vmem [#allocation7], %s133
        %vm135 = vcmask 392192
        %136 = vst.msk [vmem:[#allocation2] sm:$0xff] %vm135, 0.0
        %vm137 = vcmask 388096
        %138 = vst.msk [vmem:[#allocation2 + $0x8] sm:$0xf] %vm137, 0.0
        %139 = vst.msk [vmem:[#allocation2 + $0x10] sm:$0xff] %vm135, 0.0
        %140 = vst.msk [vmem:[#allocation2 + $0x18] sm:$0xf] %vm137, 0.0
        %s141 = scalar_lea.vmem [#allocation2], 160
        %142 = vst.msk [vmem:[%s141] sm:$0xff] %vm135, 0.0
        %143 = vst.msk [vmem:[%s141 + $0x8] sm:$0xf] %vm137, 0.0
        %144 = vst.msk [vmem:[%s141 + $0x10] sm:$0xff] %vm135, 0.0
        %145 = vst.msk [vmem:[%s141 + $0x18] sm:$0xf] %vm137, 0.0
        %s146 = scalar_lea.vmem [#allocation2], 32
        %vm147 = vcmask 386048
        %148 = vst.msk [vmem:[%s146] sm:$0x3] %vm147, 0.0
        %149 = vst.msk [vmem:[%s146 + $0x10] sm:$0x3] %vm147, 0.0
        %150 = vst.msk [vmem:[%s146 + $0x20] sm:$0x3] %vm147, 0.0
        %151 = vst.msk [vmem:[%s146 + $0x30] sm:$0x3] %vm147, 0.0
        %152 = vst.msk [vmem:[%s146 + $0x40] sm:$0x3] %vm147, 0.0
        %153 = vst.msk [vmem:[%s146 + $0x50] sm:$0x3] %vm147, 0.0
        %154 = vst.msk [vmem:[%s146 + $0x60] sm:$0x3] %vm147, 0.0
        %155 = vst.msk [vmem:[%s146 + $0x70] sm:$0x3] %vm147, 0.0
        %156 = vst.msk [vmem:[%s146 + $0xa] sm:$0x3] %vm147, 0.0
        %157 = vst.msk [vmem:[%s146 + $0x1a] sm:$0x3] %vm147, 0.0
        %158 = vst.msk [vmem:[%s146 + $0x2a] sm:$0x3] %vm147, 0.0
        %159 = vst.msk [vmem:[%s146 + $0x3a] sm:$0x3] %vm147, 0.0
        %160 = vst.msk [vmem:[%s146 + $0x4a] sm:$0x3] %vm147, 0.0
        %161 = vst.msk [vmem:[%s146 + $0x5a] sm:$0x3] %vm147, 0.0
        %162 = vst.msk [vmem:[%s146 + $0x6a] sm:$0x3] %vm147, 0.0
        %163 = vst.msk [vmem:[%s146 + $0x7a] sm:$0x3] %vm147, 0.0
        %vm164 = vcmask 64512
        %165 = vst.msk [vmem:[%s146 + $0x2] sm:$0xff] %vm164, 0.0
        %166 = vst.msk [vmem:[%s146 + $0x12] sm:$0xff] %vm164, 0.0
        %167 = vst.msk [vmem:[%s146 + $0x22] sm:$0xff] %vm164, 0.0
        %168 = vst.msk [vmem:[%s146 + $0x32] sm:$0xff] %vm164, 0.0
        %169 = vst.msk [vmem:[%s146 + $0x42] sm:$0xff] %vm164, 0.0
        %170 = vst.msk [vmem:[%s146 + $0x52] sm:$0xff] %vm164, 0.0
        %171 = vst.msk [vmem:[%s146 + $0x62] sm:$0xff] %vm164, 0.0
        %172 = vst.msk [vmem:[%s146 + $0x72] sm:$0xff] %vm164, 0.0
        %vm173 = vcmask 392512
        %174 = vst.msk [vmem:[%s146 + $0x2] sm:$0xff] %vm173, 0.0
        %175 = vst.msk [vmem:[%s146 + $0x12] sm:$0xff] %vm173, 0.0
        %176 = vst.msk [vmem:[%s146 + $0x22] sm:$0xff] %vm173, 0.0
        %177 = vst.msk [vmem:[%s146 + $0x32] sm:$0xff] %vm173, 0.0
        %178 = vst.msk [vmem:[%s146 + $0x42] sm:$0xff] %vm173, 0.0
        %179 = vst.msk [vmem:[%s146 + $0x52] sm:$0xff] %vm173, 0.0
        %180 = vst.msk [vmem:[%s146 + $0x62] sm:$0xff] %vm173, 0.0
        %181 = vst.msk [vmem:[%s146 + $0x72] sm:$0xff] %vm173, 0.0
        %v182 = vld [vmem:[%s116] sm:$0xff]
        %v183 = vld [vmem:[%s116 + $0x8] sm:$0xff]
        %v184 = vld [vmem:[%s116 + $0x10] sm:$0xff]
        %v185 = vld [vmem:[%s116 + $0x18] sm:$0xff]
        %v186 = vld [vmem:[%s116 + $0x20] sm:$0xff]
        %v187 = vld [vmem:[%s116 + $0x28] sm:$0xff]
        %v188 = vld [vmem:[%s116 + $0x30] sm:$0xff]
        %v189 = vld [vmem:[%s116 + $0x38] sm:$0xff]
        %198 = vrot.lane.b32.xlu0 %v182, 8
        %v199 = vpop.permute.xlu0 %198
        %200 = vrot.lane.b32.xlu0 %v183, 8
        %v201 = vpop.permute.xlu0 %200
        %202 = vrot.lane.b32.xlu0 %v184, 8
        %v203 = vpop.permute.xlu0 %202
        %204 = vrot.lane.b32.xlu0 %v185, 8
        %v205 = vpop.permute.xlu0 %204
        %206 = vrot.lane.b32.xlu0 %v186, 8
        %v207 = vpop.permute.xlu0 %206
        %208 = vrot.lane.b32.xlu0 %v187, 8
        %v209 = vpop.permute.xlu0 %208
        %210 = vrot.lane.b32.xlu0 %v188, 8
        %v211 = vpop.permute.xlu0 %210
        %212 = vrot.lane.b32.xlu0 %v189, 8
        %v213 = vpop.permute.xlu0 %212
        %vm222 = vcmask 326720
        %223 = vst.msk [vmem:[%s146 + $0x2] sm:$0xff] %vm222, %v199
        %224 = vst.msk [vmem:[%s146 + $0x12] sm:$0xff] %vm222, %v201
        %225 = vst.msk [vmem:[%s146 + $0x22] sm:$0xff] %vm222, %v203
        %226 = vst.msk [vmem:[%s146 + $0x32] sm:$0xff] %vm222, %v205
        %227 = vst.msk [vmem:[%s146 + $0x42] sm:$0xff] %vm222, %v207
        %228 = vst.msk [vmem:[%s146 + $0x52] sm:$0xff] %vm222, %v209
        %229 = vst.msk [vmem:[%s146 + $0x62] sm:$0xff] %vm222, %v211
        %230 = vst.msk [vmem:[%s146 + $0x72] sm:$0xff] %vm222, %v213
        %v231 = vld [vmem:[%s146] sm:$0xff]
        %v232 = vld [vmem:[%s146 + $0x8] sm:$0xf]
        %v233 = vld [vmem:[%s146 + $0x10] sm:$0xff]
        %v234 = vld [vmem:[%s146 + $0x18] sm:$0xf]
        %v235 = vld [vmem:[%s146 + $0x20] sm:$0xff]
        %v236 = vld [vmem:[%s146 + $0x28] sm:$0xf]
        %v237 = vld [vmem:[%s146 + $0x30] sm:$0xff]
        %v238 = vld [vmem:[%s146 + $0x38] sm:$0xf]
        %v239 = vld [vmem:[%s146 + $0x40] sm:$0xff]
        %v240 = vld [vmem:[%s146 + $0x48] sm:$0xf]
        %v241 = vld [vmem:[%s146 + $0x50] sm:$0xff]
        %v242 = vld [vmem:[%s146 + $0x58] sm:$0xf]
        %v243 = vld [vmem:[%s146 + $0x60] sm:$0xff]
        %v244 = vld [vmem:[%s146 + $0x68] sm:$0xf]
        %v245 = vld [vmem:[%s146 + $0x70] sm:$0xff]
        %v246 = vld [vmem:[%s146 + $0x78] sm:$0xf]
        %v247 = vmul.f32 %v231, 0.46172288
        %v248 = vmul.f32 %v232, 0.46172288
        %v249 = vmul.f32 %v233, 0.46172288
        %v250 = vmul.f32 %v234, 0.46172288
        %v251 = vmul.f32 %v235, 0.46172288
        %v252 = vmul.f32 %v236, 0.46172288
        %v253 = vmul.f32 %v237, 0.46172288
        %v254 = vmul.f32 %v238, 0.46172288
        %v255 = vmul.f32 %v239, 0.46172288
        %v256 = vmul.f32 %v240, 0.46172288
        %v257 = vmul.f32 %v241, 0.46172288
        %v258 = vmul.f32 %v242, 0.46172288
        %v259 = vmul.f32 %v243, 0.46172288
        %v260 = vmul.f32 %v244, 0.46172288
        %v261 = vmul.f32 %v245, 0.46172288
        %v262 = vmul.f32 %v246, 0.46172288
        %v263 = vld [vmem:[#allocation2] sm:$0xff]
        %v264 = vld [vmem:[#allocation2 + $0x8] sm:$0xf]
        %v265 = vld [vmem:[#allocation2 + $0x10] sm:$0xff]
        %v266 = vld [vmem:[#allocation2 + $0x18] sm:$0xf]
        %v267 = vld [vmem:[#allocation2 + $0x20] sm:$0xff]
        %v268 = vld [vmem:[#allocation2 + $0x28] sm:$0xf]
        %v269 = vld [vmem:[#allocation2 + $0x30] sm:$0xff]
        %v270 = vld [vmem:[#allocation2 + $0x38] sm:$0xf]
        %v271 = vld [vmem:[#allocation2 + $0x40] sm:$0xff]
        %v272 = vld [vmem:[#allocation2 + $0x48] sm:$0xf]
        %v273 = vld [vmem:[#allocation2 + $0x50] sm:$0xff]
        %v274 = vld [vmem:[#allocation2 + $0x58] sm:$0xf]
        %v275 = vld [vmem:[#allocation2 + $0x60] sm:$0xff]
        %v276 = vld [vmem:[#allocation2 + $0x68] sm:$0xf]
        %v277 = vld [vmem:[#allocation2 + $0x70] sm:$0xff]
        %v278 = vld [vmem:[#allocation2 + $0x78] sm:$0xf]
        %s279 = scalar_lea.vmem [#allocation2], 64
        %v280 = vld [vmem:[%s279] sm:$0xff]
        %v281 = vld [vmem:[%s279 + $0x8] sm:$0xf]
        %v282 = vld [vmem:[%s279 + $0x10] sm:$0xff]
        %v283 = vld [vmem:[%s279 + $0x18] sm:$0xf]
        %v284 = vld [vmem:[%s279 + $0x20] sm:$0xff]
        %v285 = vld [vmem:[%s279 + $0x28] sm:$0xf]
        %v286 = vld [vmem:[%s279 + $0x30] sm:$0xff]
        %v287 = vld [vmem:[%s279 + $0x38] sm:$0xf]
        %v288 = vld [vmem:[%s279 + $0x40] sm:$0xff]
        %v289 = vld [vmem:[%s279 + $0x48] sm:$0xf]
        %v290 = vld [vmem:[%s279 + $0x50] sm:$0xff]
        %v291 = vld [vmem:[%s279 + $0x58] sm:$0xf]
        %v292 = vld [vmem:[%s279 + $0x60] sm:$0xff]
        %v293 = vld [vmem:[%s279 + $0x68] sm:$0xf]
        %v294 = vld [vmem:[%s279 + $0x70] sm:$0xff]
        %v295 = vld [vmem:[%s279 + $0x78] sm:$0xf]
        %v296 = vadd.f32 %v263, %v280
        %v297 = vadd.f32 %v264, %v281
        %v298 = vadd.f32 %v265, %v282
        %v299 = vadd.f32 %v266, %v283
        %v300 = vadd.f32 %v267, %v284
        %v301 = vadd.f32 %v268, %v285
        %v302 = vadd.f32 %v269, %v286
        %v303 = vadd.f32 %v270, %v287
        %v304 = vadd.f32 %v271, %v288
        %v305 = vadd.f32 %v272, %v289
        %v306 = vadd.f32 %v273, %v290
        %v307 = vadd.f32 %v274, %v291
        %v308 = vadd.f32 %v275, %v292
        %v309 = vadd.f32 %v276, %v293
        %v310 = vadd.f32 %v277, %v294
        %v311 = vadd.f32 %v278, %v295
        %v312 = vmul.f32 %v296, 0.0320821
        %v313 = vmul.f32 %v297, 0.0320821
        %v314 = vmul.f32 %v298, 0.0320821
        %v315 = vmul.f32 %v299, 0.0320821
        %v316 = vmul.f32 %v300, 0.0320821
        %v317 = vmul.f32 %v301, 0.0320821
        %v318 = vmul.f32 %v302, 0.0320821
        %v319 = vmul.f32 %v303, 0.0320821
        %v320 = vmul.f32 %v304, 0.0320821
        %v321 = vmul.f32 %v305, 0.0320821
        %v322 = vmul.f32 %v306, 0.0320821
        %v323 = vmul.f32 %v307, 0.0320821
        %v324 = vmul.f32 %v308, 0.0320821
        %v325 = vmul.f32 %v309, 0.0320821
        %v326 = vmul.f32 %v310, 0.0320821
        %v327 = vmul.f32 %v311, 0.0320821
        %v328 = vadd.f32 %v247, %v312
        %v329 = vadd.f32 %v248, %v313
        %v330 = vadd.f32 %v249, %v314
        %v331 = vadd.f32 %v250, %v315
        %v332 = vadd.f32 %v251, %v316
        %v333 = vadd.f32 %v252, %v317
        %v334 = vadd.f32 %v253, %v318
        %v335 = vadd.f32 %v254, %v319
        %v336 = vadd.f32 %v255, %v320
        %v337 = vadd.f32 %v256, %v321
        %v338 = vadd.f32 %v257, %v322
        %v339 = vadd.f32 %v258, %v323
        %v340 = vadd.f32 %v259, %v324
        %v341 = vadd.f32 %v260, %v325
        %v342 = vadd.f32 %v261, %v326
        %v343 = vadd.f32 %v262, %v327
        %s344 = scalar_lea.vmem [#allocation2], 16
        %v345 = vld [vmem:[%s344] sm:$0xff]
        %v346 = vld [vmem:[%s344 + $0x8] sm:$0xf]
        %v347 = vld [vmem:[%s344 + $0x10] sm:$0xff]
        %v348 = vld [vmem:[%s344 + $0x18] sm:$0xf]
        %v349 = vld [vmem:[%s344 + $0x20] sm:$0xff]
        %v350 = vld [vmem:[%s344 + $0x28] sm:$0xf]
        %v351 = vld [vmem:[%s344 + $0x30] sm:$0xff]
        %v352 = vld [vmem:[%s344 + $0x38] sm:$0xf]
        %v353 = vld [vmem:[%s344 + $0x40] sm:$0xff]
        %v354 = vld [vmem:[%s344 + $0x48] sm:$0xf]
        %v355 = vld [vmem:[%s344 + $0x50] sm:$0xff]
        %v356 = vld [vmem:[%s344 + $0x58] sm:$0xf]
        %v357 = vld [vmem:[%s344 + $0x60] sm:$0xff]
        %v358 = vld [vmem:[%s344 + $0x68] sm:$0xf]
        %v359 = vld [vmem:[%s344 + $0x70] sm:$0xff]
        %v360 = vld [vmem:[%s344 + $0x78] sm:$0xf]
        %s361 = scalar_lea.vmem [#allocation2], 48
        %v362 = vld [vmem:[%s361] sm:$0xff]
        %v363 = vld [vmem:[%s361 + $0x8] sm:$0xf]
        %v364 = vld [vmem:[%s361 + $0x10] sm:$0xff]
        %v365 = vld [vmem:[%s361 + $0x18] sm:$0xf]
        %v366 = vld [vmem:[%s361 + $0x20] sm:$0xff]
        %v367 = vld [vmem:[%s361 + $0x28] sm:$0xf]
        %v368 = vld [vmem:[%s361 + $0x30] sm:$0xff]
        %v369 = vld [vmem:[%s361 + $0x38] sm:$0xf]
        %v370 = vld [vmem:[%s361 + $0x40] sm:$0xff]
        %v371 = vld [vmem:[%s361 + $0x48] sm:$0xf]
        %v372 = vld [vmem:[%s361 + $0x50] sm:$0xff]
        %v373 = vld [vmem:[%s361 + $0x58] sm:$0xf]
        %v374 = vld [vmem:[%s361 + $0x60] sm:$0xff]
        %v375 = vld [vmem:[%s361 + $0x68] sm:$0xf]
        %v376 = vld [vmem:[%s361 + $0x70] sm:$0xff]
        %v377 = vld [vmem:[%s361 + $0x78] sm:$0xf]
        %v378 = vadd.f32 %v345, %v362
        %v379 = vadd.f32 %v346, %v363
        %v380 = vadd.f32 %v347, %v364
        %v381 = vadd.f32 %v348, %v365
        %v382 = vadd.f32 %v349, %v366
        %v383 = vadd.f32 %v350, %v367
        %v384 = vadd.f32 %v351, %v368
        %v385 = vadd.f32 %v352, %v369
        %v386 = vadd.f32 %v353, %v370
        %v387 = vadd.f32 %v354, %v371
        %v388 = vadd.f32 %v355, %v372
        %v389 = vadd.f32 %v356, %v373
        %v390 = vadd.f32 %v357, %v374
        %v391 = vadd.f32 %v358, %v375
        %v392 = vadd.f32 %v359, %v376
        %v393 = vadd.f32 %v360, %v377
        %v394 = vmul.f32 %v378, 0.23705643
        %v395 = vmul.f32 %v379, 0.23705643
        %v396 = vmul.f32 %v380, 0.23705643
        %v397 = vmul.f32 %v381, 0.23705643
        %v398 = vmul.f32 %v382, 0.23705643
        %v399 = vmul.f32 %v383, 0.23705643
        %v400 = vmul.f32 %v384, 0.23705643
        %v401 = vmul.f32 %v385, 0.23705643
        %v402 = vmul.f32 %v386, 0.23705643
        %v403 = vmul.f32 %v387, 0.23705643
        %v404 = vmul.f32 %v388, 0.23705643
        %v405 = vmul.f32 %v389, 0.23705643
        %v406 = vmul.f32 %v390, 0.23705643
        %v407 = vmul.f32 %v391, 0.23705643
        %v408 = vmul.f32 %v392, 0.23705643
        %v409 = vmul.f32 %v393, 0.23705643
        %v410 = vadd.f32 %v328, %v394
        %v411 = vadd.f32 %v329, %v395
        %v412 = vadd.f32 %v330, %v396
        %v413 = vadd.f32 %v331, %v397
        %v414 = vadd.f32 %v332, %v398
        %v415 = vadd.f32 %v333, %v399
        %v416 = vadd.f32 %v334, %v400
        %v417 = vadd.f32 %v335, %v401
        %v418 = vadd.f32 %v336, %v402
        %v419 = vadd.f32 %v337, %v403
        %v420 = vadd.f32 %v338, %v404
        %v421 = vadd.f32 %v339, %v405
        %v422 = vadd.f32 %v340, %v406
        %v423 = vadd.f32 %v341, %v407
        %v424 = vadd.f32 %v342, %v408
        %v425 = vadd.f32 %v343, %v409
        %426 = vst.msk [vmem:[#allocation3] sm:$0xff] %vm135, %v410
        %427 = vst.msk [vmem:[#allocation3 + $0x8] sm:$0xf] %vm137, %v411
        %428 = vst.msk [vmem:[#allocation3 + $0x10] sm:$0xff] %vm135, %v412
        %429 = vst.msk [vmem:[#allocation3 + $0x18] sm:$0xf] %vm137, %v413
        %430 = vst.msk [vmem:[#allocation3 + $0x20] sm:$0xff] %vm135, %v414
        %431 = vst.msk [vmem:[#allocation3 + $0x28] sm:$0xf] %vm137, %v415
        %432 = vst.msk [vmem:[#allocation3 + $0x30] sm:$0xff] %vm135, %v416
        %433 = vst.msk [vmem:[#allocation3 + $0x38] sm:$0xf] %vm137, %v417
        %434 = vst.msk [vmem:[#allocation3 + $0x40] sm:$0xff] %vm135, %v418
        %435 = vst.msk [vmem:[#allocation3 + $0x48] sm:$0xf] %vm137, %v419
        %436 = vst.msk [vmem:[#allocation3 + $0x50] sm:$0xff] %vm135, %v420
        %437 = vst.msk [vmem:[#allocation3 + $0x58] sm:$0xf] %vm137, %v421
        %438 = vst.msk [vmem:[#allocation3 + $0x60] sm:$0xff] %vm135, %v422
        %439 = vst.msk [vmem:[#allocation3 + $0x68] sm:$0xf] %vm137, %v423
        %440 = vst.msk [vmem:[#allocation3 + $0x70] sm:$0xff] %vm135, %v424
        %441 = vst.msk [vmem:[#allocation3 + $0x78] sm:$0xf] %vm137, %v425
        %v442 = vld [vmem:[#allocation3 + $0x2] sm:$0xff]
        %v443 = vld [vmem:[#allocation3 + $0x12] sm:$0xff]
        %v444 = vld [vmem:[#allocation3 + $0x22] sm:$0xff]
        %v445 = vld [vmem:[#allocation3 + $0x32] sm:$0xff]
        %v446 = vld [vmem:[#allocation3 + $0x42] sm:$0xff]
        %v447 = vld [vmem:[#allocation3 + $0x52] sm:$0xff]
        %v448 = vld [vmem:[#allocation3 + $0x62] sm:$0xff]
        %v449 = vld [vmem:[#allocation3 + $0x72] sm:$0xff]
        %v450 = vmul.f32 %v442, 0.46172288
        %v451 = vmul.f32 %v443, 0.46172288
        %v452 = vmul.f32 %v444, 0.46172288
        %v453 = vmul.f32 %v445, 0.46172288
        %v454 = vmul.f32 %v446, 0.46172288
        %v455 = vmul.f32 %v447, 0.46172288
        %v456 = vmul.f32 %v448, 0.46172288
        %v457 = vmul.f32 %v449, 0.46172288
        %v458 = vld [vmem:[#allocation3] sm:$0xff]
        %v459 = vld [vmem:[#allocation3 + $0x10] sm:$0xff]
        %v460 = vld [vmem:[#allocation3 + $0x20] sm:$0xff]
        %v461 = vld [vmem:[#allocation3 + $0x30] sm:$0xff]
        %v462 = vld [vmem:[#allocation3 + $0x40] sm:$0xff]
        %v463 = vld [vmem:[#allocation3 + $0x50] sm:$0xff]
        %v464 = vld [vmem:[#allocation3 + $0x60] sm:$0xff]
        %v465 = vld [vmem:[#allocation3 + $0x70] sm:$0xff]
        %v466 = vld [vmem:[#allocation3 + $0x4] sm:$0xff]
        %v467 = vld [vmem:[#allocation3 + $0x14] sm:$0xff]
        %v468 = vld [vmem:[#allocation3 + $0x24] sm:$0xff]
        %v469 = vld [vmem:[#allocation3 + $0x34] sm:$0xff]
        %v470 = vld [vmem:[#allocation3 + $0x44] sm:$0xff]
        %v471 = vld [vmem:[#allocation3 + $0x54] sm:$0xff]
        %v472 = vld [vmem:[#allocation3 + $0x64] sm:$0xff]
        %v473 = vld [vmem:[#allocation3 + $0x74] sm:$0xff]
        %v474 = vadd.f32 %v458, %v466
        %v475 = vadd.f32 %v459, %v467
        %v476 = vadd.f32 %v460, %v468
        %v477 = vadd.f32 %v461, %v469
        %v478 = vadd.f32 %v462, %v470
        %v479 = vadd.f32 %v463, %v471
        %v480 = vadd.f32 %v464, %v472
        %v481 = vadd.f32 %v465, %v473
        %v482 = vmul.f32 %v474, 0.0320821
        %v483 = vmul.f32 %v475, 0.0320821
        %v484 = vmul.f32 %v476, 0.0320821
        %v485 = vmul.f32 %v477, 0.0320821
        %v486 = vmul.f32 %v478, 0.0320821
        %v487 = vmul.f32 %v479, 0.0320821
        %v488 = vmul.f32 %v480, 0.0320821
        %v489 = vmul.f32 %v481, 0.0320821
        %v490 = vadd.f32 %v450, %v482
        %v491 = vadd.f32 %v451, %v483
        %v492 = vadd.f32 %v452, %v484
        %v493 = vadd.f32 %v453, %v485
        %v494 = vadd.f32 %v454, %v486
        %v495 = vadd.f32 %v455, %v487
        %v496 = vadd.f32 %v456, %v488
        %v497 = vadd.f32 %v457, %v489
        %v498 = vld [vmem:[#allocation3 + $0x1] sm:$0xff]
        %v499 = vld [vmem:[#allocation3 + $0x11] sm:$0xff]
        %v500 = vld [vmem:[#allocation3 + $0x21] sm:$0xff]
        %v501 = vld [vmem:[#allocation3 + $0x31] sm:$0xff]
        %v502 = vld [vmem:[#allocation3 + $0x41] sm:$0xff]
        %v503 = vld [vmem:[#allocation3 + $0x51] sm:$0xff]
        %v504 = vld [vmem:[#allocation3 + $0x61] sm:$0xff]
        %v505 = vld [vmem:[#allocation3 + $0x71] sm:$0xff]
        %v506 = vld [vmem:[#allocation3 + $0x3] sm:$0xff]
        %v507 = vld [vmem:[#allocation3 + $0x13] sm:$0xff]
        %v508 = vld [vmem:[#allocation3 + $0x23] sm:$0xff]
        %v509 = vld [vmem:[#allocation3 + $0x33] sm:$0xff]
        %v510 = vld [vmem:[#allocation3 + $0x43] sm:$0xff]
        %v511 = vld [vmem:[#allocation3 + $0x53] sm:$0xff]
        %v512 = vld [vmem:[#allocation3 + $0x63] sm:$0xff]
        %v513 = vld [vmem:[#allocation3 + $0x73] sm:$0xff]
        %v514 = vadd.f32 %v498, %v506
        %v515 = vadd.f32 %v499, %v507
        %v516 = vadd.f32 %v500, %v508
        %v517 = vadd.f32 %v501, %v509
        %v518 = vadd.f32 %v502, %v510
        %v519 = vadd.f32 %v503, %v511
        %v520 = vadd.f32 %v504, %v512
        %v521 = vadd.f32 %v505, %v513
        %v522 = vmul.f32 %v514, 0.23705643
        %v523 = vmul.f32 %v515, 0.23705643
        %v524 = vmul.f32 %v516, 0.23705643
        %v525 = vmul.f32 %v517, 0.23705643
        %v526 = vmul.f32 %v518, 0.23705643
        %v527 = vmul.f32 %v519, 0.23705643
        %v528 = vmul.f32 %v520, 0.23705643
        %v529 = vmul.f32 %v521, 0.23705643
        %v530 = vadd.f32 %v490, %v522
        %v531 = vadd.f32 %v491, %v523
        %v532 = vadd.f32 %v492, %v524
        %v533 = vadd.f32 %v493, %v525
        %v534 = vadd.f32 %v494, %v526
        %v535 = vadd.f32 %v495, %v527
        %v536 = vadd.f32 %v496, %v528
        %v537 = vadd.f32 %v497, %v529
        %538 = vst.msk [vmem:[#allocation2] sm:$0xff] %vm135, %v530
        %539 = vst.msk [vmem:[#allocation2 + $0x10] sm:$0xff] %vm135, %v531
        %540 = vst.msk [vmem:[#allocation2 + $0x20] sm:$0xff] %vm135, %v532
        %541 = vst.msk [vmem:[#allocation2 + $0x30] sm:$0xff] %vm135, %v533
        %542 = vst.msk [vmem:[#allocation2 + $0x40] sm:$0xff] %vm135, %v534
        %543 = vst.msk [vmem:[#allocation2 + $0x50] sm:$0xff] %vm135, %v535
        %544 = vst.msk [vmem:[#allocation2 + $0x60] sm:$0xff] %vm135, %v536
        %545 = vst.msk [vmem:[#allocation2 + $0x70] sm:$0xff] %vm135, %v537
        %v546 = vld [vmem:[#allocation2] sm:$0xff]
        %v547 = vld [vmem:[#allocation2 + $0x10] sm:$0xff]
        %v548 = vld [vmem:[#allocation2 + $0x20] sm:$0xff]
        %v549 = vld [vmem:[#allocation2 + $0x30] sm:$0xff]
        %v550 = vld [vmem:[#allocation2 + $0x40] sm:$0xff]
        %v551 = vld [vmem:[#allocation2 + $0x50] sm:$0xff]
        %v552 = vld [vmem:[#allocation2 + $0x60] sm:$0xff]
        %v553 = vld [vmem:[#allocation2 + $0x70] sm:$0xff]
        %v554 = vmul.f32 %v546, 0.46172288
        %v555 = vmul.f32 %v547, 0.46172288
        %v556 = vmul.f32 %v548, 0.46172288
        %v557 = vmul.f32 %v549, 0.46172288
        %v558 = vmul.f32 %v550, 0.46172288
        %v559 = vmul.f32 %v551, 0.46172288
        %v560 = vmul.f32 %v552, 0.46172288
        %v561 = vmul.f32 %v553, 0.46172288
        %570 = vrot.lane.b32.xlu0 %v546, 112
        %v571 = vpop.permute.xlu0 %570
        %572 = vrot.lane.b32.xlu0 %v547, 112
        %v573 = vpop.permute.xlu0 %572
        %574 = vrot.lane.b32.xlu0 %v548, 112
        %v575 = vpop.permute.xlu0 %574
        %576 = vrot.lane.b32.xlu0 %v549, 112
        %v577 = vpop.permute.xlu0 %576
        %578 = vrot.lane.b32.xlu0 %v550, 112
        %v579 = vpop.permute.xlu0 %578
        %580 = vrot.lane.b32.xlu0 %v551, 112
        %v581 = vpop.permute.xlu0 %580
        %582 = vrot.lane.b32.xlu0 %v552, 112
        %v583 = vpop.permute.xlu0 %582
        %584 = vrot.lane.b32.xlu0 %v553, 112
        %v585 = vpop.permute.xlu0 %584
        %v594 = vadd.f32 %v546, %v571
        %v595 = vadd.f32 %v547, %v573
        %v596 = vadd.f32 %v548, %v575
        %v597 = vadd.f32 %v549, %v577
        %v598 = vadd.f32 %v550, %v579
        %v599 = vadd.f32 %v551, %v581
        %v600 = vadd.f32 %v552, %v583
        %v601 = vadd.f32 %v553, %v585
        %v602 = vmul.f32 %v594, 0.0320821
        %v603 = vmul.f32 %v595, 0.0320821
        %v604 = vmul.f32 %v596, 0.0320821
        %v605 = vmul.f32 %v597, 0.0320821
        %v606 = vmul.f32 %v598, 0.0320821
        %v607 = vmul.f32 %v599, 0.0320821
        %v608 = vmul.f32 %v600, 0.0320821
        %v609 = vmul.f32 %v601, 0.0320821
        %618 = vrot.lane.b32.xlu0 %v602, 8
        %v619 = vpop.permute.xlu0 %618
        %620 = vrot.lane.b32.xlu0 %v603, 8
        %v621 = vpop.permute.xlu0 %620
        %622 = vrot.lane.b32.xlu0 %v604, 8
        %v623 = vpop.permute.xlu0 %622
        %624 = vrot.lane.b32.xlu0 %v605, 8
        %v625 = vpop.permute.xlu0 %624
        %626 = vrot.lane.b32.xlu0 %v606, 8
        %v627 = vpop.permute.xlu0 %626
        %628 = vrot.lane.b32.xlu0 %v607, 8
        %v629 = vpop.permute.xlu0 %628
        %630 = vrot.lane.b32.xlu0 %v608, 8
        %v631 = vpop.permute.xlu0 %630
        %632 = vrot.lane.b32.xlu0 %v609, 8
        %v633 = vpop.permute.xlu0 %632
        %v642 = vadd.f32 %v554, %v619
        %v643 = vadd.f32 %v555, %v621
        %v644 = vadd.f32 %v556, %v623
        %v645 = vadd.f32 %v557, %v625
        %v646 = vadd.f32 %v558, %v627
        %v647 = vadd.f32 %v559, %v629
        %v648 = vadd.f32 %v560, %v631
        %v649 = vadd.f32 %v561, %v633
        %650 = vrot.lane.b32.xlu0 %v546, 120
        %v651 = vpop.permute.xlu0 %650
        %652 = vrot.lane.b32.xlu0 %v547, 120
        %v653 = vpop.permute.xlu0 %652
        %654 = vrot.lane.b32.xlu0 %v548, 120
        %v655 = vpop.permute.xlu0 %654
        %656 = vrot.lane.b32.xlu0 %v549, 120
        %v657 = vpop.permute.xlu0 %656
        %658 = vrot.lane.b32.xlu0 %v550, 120
        %v659 = vpop.permute.xlu0 %658
        %660 = vrot.lane.b32.xlu0 %v551, 120
        %v661 = vpop.permute.xlu0 %660
        %662 = vrot.lane.b32.xlu0 %v552, 120
        %v663 = vpop.permute.xlu0 %662
        %664 = vrot.lane.b32.xlu0 %v553, 120
        %v665 = vpop.permute.xlu0 %664
        %v674 = vadd.f32 %v546, %v651
        %v675 = vadd.f32 %v547, %v653
        %v676 = vadd.f32 %v548, %v655
        %v677 = vadd.f32 %v549, %v657
        %v678 = vadd.f32 %v550, %v659
        %v679 = vadd.f32 %v551, %v661
        %v680 = vadd.f32 %v552, %v663
        %v681 = vadd.f32 %v553, %v665
        %v682 = vmul.f32 %v674, 0.23705643
        %v683 = vmul.f32 %v675, 0.23705643
        %v684 = vmul.f32 %v676, 0.23705643
        %v685 = vmul.f32 %v677, 0.23705643
        %v686 = vmul.f32 %v678, 0.23705643
        %v687 = vmul.f32 %v679, 0.23705643
        %v688 = vmul.f32 %v680, 0.23705643
        %v689 = vmul.f32 %v681, 0.23705643
        %698 = vrot.lane.b32.xlu0 %v682, 4
        %v699 = vpop.permute.xlu0 %698
        %700 = vrot.lane.b32.xlu0 %v683, 4
        %v701 = vpop.permute.xlu0 %700
        %702 = vrot.lane.b32.xlu0 %v684, 4
        %v703 = vpop.permute.xlu0 %702
        %704 = vrot.lane.b32.xlu0 %v685, 4
        %v705 = vpop.permute.xlu0 %704
        %706 = vrot.lane.b32.xlu0 %v686, 4
        %v707 = vpop.permute.xlu0 %706
        %708 = vrot.lane.b32.xlu0 %v687, 4
        %v709 = vpop.permute.xlu0 %708
        %710 = vrot.lane.b32.xlu0 %v688, 4
        %v711 = vpop.permute.xlu0 %710
        %712 = vrot.lane.b32.xlu0 %v689, 4
        %v713 = vpop.permute.xlu0 %712
        %v722 = vadd.f32 %v642, %v699
        %v723 = vadd.f32 %v643, %v701
        %v724 = vadd.f32 %v644, %v703
        %v725 = vadd.f32 %v645, %v705
        %v726 = vadd.f32 %v646, %v707
        %v727 = vadd.f32 %v647, %v709
        %v728 = vadd.f32 %v648, %v711
        %v729 = vadd.f32 %v649, %v713
        %738 = vrot.lane.b32.xlu0 %v722, 120
        %v739 = vpop.permute.xlu0 %738
        %740 = vrot.lane.b32.xlu0 %v723, 120
        %v741 = vpop.permute.xlu0 %740
        %742 = vrot.lane.b32.xlu0 %v724, 120
        %v743 = vpop.permute.xlu0 %742
        %744 = vrot.lane.b32.xlu0 %v725, 120
        %v745 = vpop.permute.xlu0 %744
        %746 = vrot.lane.b32.xlu0 %v726, 120
        %v747 = vpop.permute.xlu0 %746
        %748 = vrot.lane.b32.xlu0 %v727, 120
        %v749 = vpop.permute.xlu0 %748
        %750 = vrot.lane.b32.xlu0 %v728, 120
        %v751 = vpop.permute.xlu0 %750
        %752 = vrot.lane.b32.xlu0 %v729, 120
        %v753 = vpop.permute.xlu0 %752
        %vm762 = vcmask 261120
        %763 = vst.msk [vmem:[%s134] sm:$0xff] %vm762, %v739
        %764 = vst.msk [vmem:[%s134 + $0x8] sm:$0xff] %vm762, %v741
        %765 = vst.msk [vmem:[%s134 + $0x10] sm:$0xff] %vm762, %v743
        %766 = vst.msk [vmem:[%s134 + $0x18] sm:$0xff] %vm762, %v745
        %767 = vst.msk [vmem:[%s134 + $0x20] sm:$0xff] %vm762, %v747
        %768 = vst.msk [vmem:[%s134 + $0x28] sm:$0xff] %vm762, %v749
        %769 = vst.msk [vmem:[%s134 + $0x30] sm:$0xff] %vm762, %v751
        %770 = vst.msk [vmem:[%s134 + $0x38] sm:$0xff] %vm762, %v753
        %s771 = sand.u32 %s52, 1
        %s772 = scalar_lea.sflag [#allocation6], %s771
        %s773 = sand.u32 %s52, 1
        %s774 = smul.addr %s773, 64
        %s775 = scalar_lea.vmem [#allocation7], %s774
        // Predicated region
        $region29: #{tpu_custom_call.1} parent=23 // pred_check
          %p776 = pneg %p62
        $region30: #{tpu_custom_call.1} parent=23 // pred_check_branch
          %778 = sbr.rel (%p776) target = $region32
        $region31: #{tpu_custom_call.1} parent=23 // pred_region
          %s780 = ssub.s32 1024, 1024
          %781 = vsyncadd %s772, %s780
          %s782 = smul.addr %s18, 8
          %s783 = smul.addr %s782, 128
          %s784 = scalar_lea.hbm %s1, %s783
          %s785 = sshll.u32 %s775, 4
          %s786 = int_to_ptr.vmem [resolvable:$true] %s785
          %791 = dma.vmem_to_hbm [thread:$0]  %s786, 1024, %s784, %s772, 128, 128, 8
        $region32: #{tpu_custom_call.1} parent=23 // pred_fallthru
          _
      $region24: #{tpu_custom_call.1} parent=5 // pred_fallthru
        _
      %p792 = scmp.le.s32.totalorder 2, %s13
      // Predicated region
      $region33: #{tpu_custom_call.1} parent=5 // pred_check
        %p793 = pneg %p792
      $region34: #{tpu_custom_call.1} parent=5 // pred_check_branch
        %795 = sbr.rel (%p793) target = $region36
      $region35: #{tpu_custom_call.1} parent=5 // pred_region
        %s796 = ssub.s32 %s13, 2
        // Predicated region
        $region37: #{tpu_custom_call.1} parent=35 // pred_check
          %p797 = pneg %p68
        $region38: #{tpu_custom_call.1} parent=35 // pred_check_branch
          %799 = sbr.rel (%p797) target = $region40
        $region39: #{tpu_custom_call.1} parent=35 // pred_region
          %s800 = sand.u32 %s53, 1
          %s801 = scalar_lea.sflag [#allocation6], %s800
          %s802 = sand.u32 %s53, 1
          %s803 = smul.addr %s802, 64
          %s804 = scalar_lea.vmem [#allocation7], %s803
          %805 = dma.done %s801, 1024
        $region40: #{tpu_custom_call.1} parent=35 // pred_fallthru
          _
      $region36: #{tpu_custom_call.1} parent=5 // pred_fallthru
        _
    $region6: #{tpu_custom_call.1} parent=1 // loop_footer
      %s17 = sadd.s32 1, %s13
    $region7: #{tpu_custom_call.1} parent=1 // loop_footer_branch
      %12 = sbr.rel target = $region3
    $region8: #{tpu_custom_call.1} parent=1 // loop_exit
      _
    %806 = vsyncpa [#allocation5], 1
    %s807 = scalar_lea.sflag [#allocation5], 1
    %808 = vsyncpa %s807, 1
    %809 = vsyncpa [#allocation6], 1
    %s810 = scalar_lea.sflag [#allocation6], 1
    %811 = vsyncpa %s810, 1

</llo_original>
